<compile_context>
chip_gen: v5e
topology: v5e:2x2
jax: 0.10.0
libtpu: 0.0.40
codegen_flags: <defaults>
</compile_context>

<pallas_src>
import math

import jax
import jax.numpy as jnp
from jax.experimental import pallas as pl
from jax.experimental.pallas import tpu as pltpu


_LOG_CLAMP = -100.0      # torch.nn.BCELoss clamps every log term at -100.
_DICE_SMOOTH = 1.0
_NUM_LABEL_BITS = 64     # presence bitmask covers labels in [0, 64)


def _pick_rows(rows, max_rows):
    """Largest multiple of 8 that divides `rows` and is <= max_rows."""
    cand = min(max_rows, rows)
    cand -= cand % 8
    while cand >= 8:
        if rows % cand == 0:
            return cand
        cand -= 8
    raise ValueError(f"HW//128={rows} must be a multiple of 8")


def _auto_num_parallel(batch):
    """Parallel chunks per batch: 1 on single-TC chips (v5e/v6e), and on v7x
    only add a chunk split when the batch alone cannot feed both TensorCores."""
    try:
        kind = jax.devices()[0].device_kind.lower()
    except Exception:
        kind = ""
    if "v7" in kind:                       # two TensorCores per chip
        return 1 if batch >= 2 else 2
    return 1                               # v5e / v6e: single TensorCore


def connected_loss_v3(pred_out, target_mask, *, max_rows=512, num_parallel=None):
    """Pallas TPU version of ConnectedLossV3.forward (primary BCE+Dice term)."""
    B, C, H, W = pred_out.shape
    assert C >= 2, "needs at least 2 channels (uses pred_out[:, 1])"
    HW = H * W
    assert HW % 1024 == 0, "H*W must be a multiple of 1024 (8 sublanes x 128 lanes)"
    ROWS = HW // 128

    # target_mask: (B, 1, H, W) or (B, H, W); labels assumed in [0, 64).
    if target_mask.ndim == 4:
        assert target_mask.shape[1] == 1, "target_mask must have a single channel"
        tgt = target_mask[:, 0]
    else:
        assert target_mask.ndim == 3
        tgt = target_mask

    R = _pick_rows(ROWS, max_rows)         # rows (of 128 lanes) per block
    G = R // 8                             # sublane groups per block
    n_tiles = ROWS // R
    if num_parallel is None:
        num_parallel = _auto_num_parallel(B)
    n_par = max(1, math.gcd(n_tiles, num_parallel))   # chunks per batch sample
    n_inner = n_tiles // n_par                         # reduction steps / chunk
    n_chunks = B * n_par

    # Metadata-only reshapes; NO dtype casts here (blocks are cast in-kernel so
    # HBM traffic stays at the input dtype width, e.g. bf16 pred stays bf16).
    pred4 = pred_out.reshape(B, C, ROWS, 128)
    tgt3 = tgt.reshape(B, ROWS, 128)

    def kernel(pred_ref, tgt_ref, sums_ref, pres_ref,
               bce_acc, pt_acc, ppt_acc, or_acc):
        i = pl.program_id(2)

        @pl.when(i == 0)
        def _init():
            bce_acc[...] = jnp.zeros_like(bce_acc)
            pt_acc[...] = jnp.zeros_like(pt_acc)
            ppt_acc[...] = jnp.zeros_like(ppt_acc)
            or_acc[...] = jnp.zeros_like(or_acc)

        def _group_sum(v):          # (R,128) f32 -> (8,128): in-register adds
            return jnp.sum(v.reshape(G, 8, 128), axis=0)

        def _group_or(v):           # (R,128) i32 -> (8,128): in-register ORs
            vg = v.reshape(G, 8, 128)
            out = vg[0]
            for g in range(1, G):
                out = jnp.bitwise_or(out, vg[g])
            return out

        # pred_masks = argmax over channels; (pred_masks > 0) <=> channel 0 does
        # NOT attain the max (torch.argmax first-occurrence tie rule).  Max and
        # compare stay in the source dtype; only channel 1 is widened to f32.
        x0 = pred_ref[0]                                  # (R, 128) src dtype
        vmax = x0
        for ch in range(1, C):
            vmax = jnp.maximum(vmax, pred_ref[ch])
        fg = (x0 < vmax).astype(jnp.float32)
        p = pred_ref[1].astype(jnp.float32) * fg          # pred[:,1]*(argmax>0)

        tm = tgt_ref[...]                                 # (R, 128) src dtype
        t = (tm > 0).astype(jnp.float32)                  # (target > 0).float()

        # BCE with torch's -100 log clamp.  t is exactly 0/1, so one selected
        # log per element (halves EUP transcendental work).
        p_sel = jnp.where(t > 0.5, p, 1.0 - p)
        bce = -jnp.maximum(jnp.log(p_sel), _LOG_CLAMP)

        # Single (8,128) accumulator RMW per quantity per step.
        bce_acc[...] += _group_sum(bce)
        pt_acc[...] += _group_sum(p * t)
        ppt_acc[...] += _group_sum(p + t)         # dice only needs Σp + Σt

        # Presence bitmask for len(unique(target_mask)); labels in [0, 64).
        lab = tm.astype(jnp.int32)
        bit = jnp.left_shift(jnp.ones_like(lab), jnp.bitwise_and(lab, 31))
        lo = jnp.where((lab >= 0) & (lab < 32), bit, 0)
        hi = jnp.where((lab >= 32) & (lab < _NUM_LABEL_BITS), bit, 0)
        or_acc[0] = jnp.bitwise_or(or_acc[0], _group_or(lo))
        or_acc[1] = jnp.bitwise_or(or_acc[1], _group_or(hi))

        @pl.when(i == pl.num_programs(2) - 1)
        def _finalize():
            def _tot(acc):                         # (8,128) -> (1,1)
                v = jnp.sum(acc[...], axis=1, keepdims=True)
                return jnp.sum(v, axis=0, keepdims=True)
            sums_ref[...] = jnp.concatenate(
                [_tot(bce_acc), _tot(pt_acc), _tot(ppt_acc),
                 jnp.zeros((1, 1), jnp.float32)], axis=1)      # (1, 4)
            pres_ref[...] = or_acc[...]                          # (2, 8, 128)

    sums, pres = pl.pallas_call(
        kernel,
        out_shape=(
            jax.ShapeDtypeStruct((n_chunks, 1, 4), jnp.float32),
            jax.ShapeDtypeStruct((n_chunks, 2, 8, 128), jnp.int32),
        ),
        grid_spec=pltpu.PrefetchScalarGridSpec(
            num_scalar_prefetch=0,
            grid=(B, n_par, n_inner),
            in_specs=[
                pl.BlockSpec((pl.Squeezed(), C, R, 128),
                             lambda b, c, i: (b, 0, c * n_inner + i, 0)),
                pl.BlockSpec((pl.Squeezed(), R, 128),
                             lambda b, c, i: (b, c * n_inner + i, 0)),
            ],
            out_specs=[
                pl.BlockSpec((pl.Squeezed(), 1, 4),
                             lambda b, c, i: (b * n_par + c, 0, 0)),
                pl.BlockSpec((pl.Squeezed(), 2, 8, 128),
                             lambda b, c, i: (b * n_par + c, 0, 0, 0)),
            ],
            scratch_shapes=[pltpu.VMEM((8, 128), jnp.float32)] * 3
                           + [pltpu.VMEM((2, 8, 128), jnp.int32)],
        ),
        compiler_params=pltpu.CompilerParams(
            dimension_semantics=("parallel", "parallel", "arbitrary"),
            vmem_limit_bytes=32 * 1024 * 1024,   # safe ceiling on v5e/v6e/v7x
        ),
        cost_estimate=pl.CostEstimate(
            flops=B * HW * (C + 16),
            transcendentals=B * HW,
            bytes_accessed=(pred4.size * pred4.dtype.itemsize
                            + tgt3.size * tgt3.dtype.itemsize
                            + n_chunks * (4 + 2 * 8 * 128) * 4),
        ),
    )(pred4, tgt3)

    # Tiny scalar glue: combine per-chunk partials.
    totals = jnp.sum(sums.reshape(B, n_par, 4), axis=1)        # (B, 4)
    bce = jnp.sum(totals[:, 0]) / float(B * HW)                # BCELoss 'mean'
    inter, p_plus_t = totals[:, 1], totals[:, 2]
    dice = (2.0 * inter + _DICE_SMOOTH) / (p_plus_t + _DICE_SMOOTH)
    res_loss = bce + (1.0 - jnp.mean(dice))

    # len(torch.unique(target_mask)) from the presence bitmask (labels [0,64)).
    bits = jnp.arange(32, dtype=jnp.int32)
    present = jnp.any((jnp.right_shift(pres[..., None], bits) & 1) > 0,
                      axis=(0, 2, 3))                          # (2, 32)
    n_unique = jnp.maximum(jnp.sum(present).astype(jnp.float32), 1.0)
    return res_loss / n_unique


def _reference(pred_out, target_mask):
    """Pure-JAX reference of the implemented portion (for sanity checking)."""
    x = pred_out.astype(jnp.float32)
    B = x.shape[0]
    tgt = target_mask[:, 0] if target_mask.ndim == 4 else target_mask
    pred_masks = jnp.argmax(x, axis=1)                         # (B, H, W)
    p = x[:, 1] * (pred_masks > 0).astype(jnp.float32)
    t = (tgt > 0).astype(jnp.float32)

    log_p = jnp.maximum(jnp.log(p), _LOG_CLAMP)
    log_1mp = jnp.maximum(jnp.log(1.0 - p), _LOG_CLAMP)
    bce = jnp.mean(-(t * log_p + (1.0 - t) * log_1mp))

    pf, tf = p.reshape(B, -1), t.reshape(B, -1)
    inter = jnp.sum(pf * tf, axis=1)
    dice = (2.0 * inter + _DICE_SMOOTH) / (jnp.sum(pf, axis=1)
                                           + jnp.sum(tf, axis=1) + _DICE_SMOOTH)
    res_loss = bce + (1.0 - jnp.mean(dice))

    labels = jnp.arange(_NUM_LABEL_BITS, dtype=jnp.int32)
    flat = target_mask.reshape(-1).astype(jnp.int32)
    present = jnp.any(flat[:, None] == labels[None, :], axis=0)
    n_unique = jnp.maximum(jnp.sum(present).astype(jnp.float32), 1.0)
    return res_loss / n_unique


if __name__ == "__main__":
    key = jax.random.PRNGKey(0)
    k1, k2 = jax.random.split(key)

    B, C, H, W = 2, 4, 64, 64          # H*W = 4096 -> 32 rows of 128 lanes
    # BCELoss requires inputs in [0, 1]: use softmax over channels.
    logits = jax.random.normal(k1, (B, C, H, W), dtype=jnp.float32)
    pred_out = jax.nn.softmax(logits, axis=1)
    target_mask = jax.random.randint(k2, (B, 1, H, W), 0, 5, dtype=jnp.int32)

    # max_rows=8 / num_parallel=2 exercise the batch, parallel-chunk and
    # in-chunk reduction grid axes at this small size.  Production use: leave
    # the defaults (max_rows=512, num_parallel=None -> generation-aware).
    loss = connected_loss_v3(pred_out, target_mask, max_rows=8, num_parallel=2)
    loss = jax.block_until_ready(loss)

    ref = jax.block_until_ready(_reference(pred_out, target_mask))
    assert jnp.allclose(loss, ref, rtol=1e-4, atol=1e-5), (loss, ref)

    print("KERNEL_OK")
</pallas_src>

<mosaic_0001>
module attributes {stable_mosaic.version = 11 : i64} {
  func.func @kernel(%arg0: i32, %arg1: i32, %arg2: i32, %arg3: memref<1x4x8x128xf32, #tpu.memory_space<vmem>>, %arg4: memref<1x8x128xi32, #tpu.memory_space<vmem>>, %arg5: memref<1x1x4xf32, #tpu.memory_space<vmem>>, %arg6: memref<1x2x8x128xi32, #tpu.memory_space<vmem>>, %arg7: memref<8x128xf32, #tpu.memory_space<vmem>>, %arg8: memref<8x128xf32, #tpu.memory_space<vmem>>, %arg9: memref<8x128xf32, #tpu.memory_space<vmem>>, %arg10: memref<2x8x128xi32, #tpu.memory_space<vmem>>) attributes {dimension_semantics = [#tpu.dimension_semantics<parallel>, #tpu.dimension_semantics<parallel>, #tpu.dimension_semantics<arbitrary>], iteration_bounds = array<i64: 2, 2, 2>, scalar_prefetch = 0 : i64, scratch_operands = 4 : i64, tpu.core_type = #tpu.core_type<tc>, window_params = [{transform_indices = @transform_0, window_bounds = array<i64: 1, 4, 8, 128>}, {transform_indices = @transform_1, window_bounds = array<i64: 1, 8, 128>}, {transform_indices = @transform_2, window_bounds = array<i64: 1, 1, 4>}, {transform_indices = @transform_3, window_bounds = array<i64: 1, 2, 8, 128>}]} {
    %c0_i32 = arith.constant 0 : i32
    %0 = arith.cmpi eq, %arg2, %c0_i32 : i32
    %1 = arith.extui %0 : i1 to i32
    %c0_i32_0 = arith.constant 0 : i32
    %2 = arith.cmpi ne, %1, %c0_i32_0 : i32
    scf.if %2 {
      %cst_57 = arith.constant 0.000000e+00 : f32
      %90 = vector.broadcast %cst_57 : f32 to vector<8x128xf32>
      %c0_58 = arith.constant 0 : index
      %c0_59 = arith.constant 0 : index
      %91 = vector.load %arg7[%c0_58, %c0_59] : memref<8x128xf32, #tpu.memory_space<vmem>>, vector<8x128xf32>
      tpu.vector_store %arg7[%c0_58, %c0_59], %90 {strides = array<i32>} : memref<8x128xf32, #tpu.memory_space<vmem>>, vector<8x128xf32>,
      %cst_60 = arith.constant 0.000000e+00 : f32
      %92 = vector.broadcast %cst_60 : f32 to vector<8x128xf32>
      %c0_61 = arith.constant 0 : index
      %c0_62 = arith.constant 0 : index
      %93 = vector.load %arg8[%c0_61, %c0_62] : memref<8x128xf32, #tpu.memory_space<vmem>>, vector<8x128xf32>
      tpu.vector_store %arg8[%c0_61, %c0_62], %92 {strides = array<i32>} : memref<8x128xf32, #tpu.memory_space<vmem>>, vector<8x128xf32>,
      %cst_63 = arith.constant 0.000000e+00 : f32
      %94 = vector.broadcast %cst_63 : f32 to vector<8x128xf32>
      %c0_64 = arith.constant 0 : index
      %c0_65 = arith.constant 0 : index
      %95 = vector.load %arg9[%c0_64, %c0_65] : memref<8x128xf32, #tpu.memory_space<vmem>>, vector<8x128xf32>
      tpu.vector_store %arg9[%c0_64, %c0_65], %94 {strides = array<i32>} : memref<8x128xf32, #tpu.memory_space<vmem>>, vector<8x128xf32>,
      %c0_i32_66 = arith.constant 0 : i32
      %96 = vector.broadcast %c0_i32_66 : i32 to vector<2x8x128xi32>
      %c0_67 = arith.constant 0 : index
      %c0_68 = arith.constant 0 : index
      %c0_69 = arith.constant 0 : index
      %97 = vector.load %arg10[%c0_67, %c0_68, %c0_69] : memref<2x8x128xi32, #tpu.memory_space<vmem>>, vector<2x8x128xi32>
      tpu.vector_store %arg10[%c0_67, %c0_68, %c0_69], %96 {strides = array<i32>} : memref<2x8x128xi32, #tpu.memory_space<vmem>>, vector<2x8x128xi32>,
    } else {
    }
    %c0 = arith.constant 0 : index
    %c0_1 = arith.constant 0 : index
    %c0_2 = arith.constant 0 : index
    %c0_3 = arith.constant 0 : index
    %3 = vector.load %arg3[%c0, %c0_1, %c0_2, %c0_3] : memref<1x4x8x128xf32, #tpu.memory_space<vmem>>, vector<1x1x8x128xf32>
    %4 = vector.shape_cast %3 : vector<1x1x8x128xf32> to vector<8x128xf32>
    %c0_4 = arith.constant 0 : index
    %c1 = arith.constant 1 : index
    %c0_5 = arith.constant 0 : index
    %c0_6 = arith.constant 0 : index
    %5 = vector.load %arg3[%c0_4, %c1, %c0_5, %c0_6] : memref<1x4x8x128xf32, #tpu.memory_space<vmem>>, vector<1x1x8x128xf32>
    %6 = vector.shape_cast %5 : vector<1x1x8x128xf32> to vector<8x128xf32>
    %7 = arith.maximumf %4, %6 : vector<8x128xf32>
    %c0_7 = arith.constant 0 : index
    %c2 = arith.constant 2 : index
    %c0_8 = arith.constant 0 : index
    %c0_9 = arith.constant 0 : index
    %8 = vector.load %arg3[%c0_7, %c2, %c0_8, %c0_9] : memref<1x4x8x128xf32, #tpu.memory_space<vmem>>, vector<1x1x8x128xf32>
    %9 = vector.shape_cast %8 : vector<1x1x8x128xf32> to vector<8x128xf32>
    %10 = arith.maximumf %7, %9 : vector<8x128xf32>
    %c0_10 = arith.constant 0 : index
    %c3 = arith.constant 3 : index
    %c0_11 = arith.constant 0 : index
    %c0_12 = arith.constant 0 : index
    %11 = vector.load %arg3[%c0_10, %c3, %c0_11, %c0_12] : memref<1x4x8x128xf32, #tpu.memory_space<vmem>>, vector<1x1x8x128xf32>
    %12 = vector.shape_cast %11 : vector<1x1x8x128xf32> to vector<8x128xf32>
    %13 = arith.maximumf %10, %12 : vector<8x128xf32>
    %14 = arith.cmpf olt, %4, %13 : vector<8x128xf32>
    %15 = arith.extui %14 : vector<8x128xi1> to vector<8x128xi32>
    %16 = arith.sitofp %15 : vector<8x128xi32> to vector<8x128xf32>
    %c0_13 = arith.constant 0 : index
    %c1_14 = arith.constant 1 : index
    %c0_15 = arith.constant 0 : index
    %c0_16 = arith.constant 0 : index
    %17 = vector.load %arg3[%c0_13, %c1_14, %c0_15, %c0_16] : memref<1x4x8x128xf32, #tpu.memory_space<vmem>>, vector<1x1x8x128xf32>
    %18 = vector.shape_cast %17 : vector<1x1x8x128xf32> to vector<8x128xf32>
    %19 = arith.mulf %18, %16 : vector<8x128xf32>
    %c0_17 = arith.constant 0 : index
    %c0_18 = arith.constant 0 : index
    %c0_19 = arith.constant 0 : index
    %20 = vector.load %arg4[%c0_17, %c0_18, %c0_19] : memref<1x8x128xi32, #tpu.memory_space<vmem>>, vector<1x8x128xi32>
    %21 = vector.shape_cast %20 : vector<1x8x128xi32> to vector<8x128xi32>
    %c0_i32_20 = arith.constant 0 : i32
    %22 = vector.broadcast %c0_i32_20 : i32 to vector<8x128xi32>
    %23 = arith.cmpi sgt, %21, %22 : vector<8x128xi32>
    %24 = arith.extui %23 : vector<8x128xi1> to vector<8x128xi32>
    %25 = arith.sitofp %24 : vector<8x128xi32> to vector<8x128xf32>
    %cst = arith.constant 5.000000e-01 : f32
    %26 = vector.broadcast %cst : f32 to vector<8x128xf32>
    %27 = arith.cmpf ogt, %25, %26 : vector<8x128xf32>
    %cst_21 = arith.constant 1.000000e+00 : f32
    %28 = vector.broadcast %cst_21 : f32 to vector<8x128xf32>
    %29 = arith.subf %28, %19 : vector<8x128xf32>
    %30 = arith.select %27, %19, %29 : vector<8x128xi1>, vector<8x128xf32>
    %31 = math.log %30 : vector<8x128xf32>
    %cst_22 = arith.constant -1.000000e+02 : f32
    %32 = vector.broadcast %cst_22 : f32 to vector<8x128xf32>
    %33 = arith.maximumf %31, %32 : vector<8x128xf32>
    %cst_23 = arith.constant 0.000000e+00 : f32
    %34 = vector.broadcast %cst_23 : f32 to vector<8x128xf32>
    %35 = arith.subf %34, %33 : vector<8x128xf32>
    %c0_24 = arith.constant 0 : index
    %c0_25 = arith.constant 0 : index
    %36 = vector.load %arg7[%c0_24, %c0_25] : memref<8x128xf32, #tpu.memory_space<vmem>>, vector<8x128xf32>
    %37 = vector.shape_cast %35 : vector<8x128xf32> to vector<1x8x128xf32>
    %cst_26 = arith.constant dense<0.000000e+00> : vector<8x128xf32>
    %38 = vector.multi_reduction <add>, %37, %cst_26 [0] : vector<1x8x128xf32> to vector<8x128xf32>
    %39 = arith.addf %36, %38 : vector<8x128xf32>
    %c0_27 = arith.constant 0 : index
    %c0_28 = arith.constant 0 : index
    %40 = vector.load %arg7[%c0_27, %c0_28] : memref<8x128xf32, #tpu.memory_space<vmem>>, vector<8x128xf32>
    tpu.vector_store %arg7[%c0_27, %c0_28], %39 {strides = array<i32>} : memref<8x128xf32, #tpu.memory_space<vmem>>, vector<8x128xf32>,
    %c0_29 = arith.constant 0 : index
    %c0_30 = arith.constant 0 : index
    %41 = vector.load %arg8[%c0_29, %c0_30] : memref<8x128xf32, #tpu.memory_space<vmem>>, vector<8x128xf32>
    %42 = arith.mulf %19, %25 : vector<8x128xf32>
    %43 = vector.shape_cast %42 : vector<8x128xf32> to vector<1x8x128xf32>
    %cst_31 = arith.constant dense<0.000000e+00> : vector<8x128xf32>
    %44 = vector.multi_reduction <add>, %43, %cst_31 [0] : vector<1x8x128xf32> to vector<8x128xf32>
    %45 = arith.addf %41, %44 : vector<8x128xf32>
    %c0_32 = arith.constant 0 : index
    %c0_33 = arith.constant 0 : index
    %46 = vector.load %arg8[%c0_32, %c0_33] : memref<8x128xf32, #tpu.memory_space<vmem>>, vector<8x128xf32>
    tpu.vector_store %arg8[%c0_32, %c0_33], %45 {strides = array<i32>} : memref<8x128xf32, #tpu.memory_space<vmem>>, vector<8x128xf32>,
    %c0_34 = arith.constant 0 : index
    %c0_35 = arith.constant 0 : index
    %47 = vector.load %arg9[%c0_34, %c0_35] : memref<8x128xf32, #tpu.memory_space<vmem>>, vector<8x128xf32>
    %48 = arith.addf %19, %25 : vector<8x128xf32>
    %49 = vector.shape_cast %48 : vector<8x128xf32> to vector<1x8x128xf32>
    %cst_36 = arith.constant dense<0.000000e+00> : vector<8x128xf32>
    %50 = vector.multi_reduction <add>, %49, %cst_36 [0] : vector<1x8x128xf32> to vector<8x128xf32>
    %51 = arith.addf %47, %50 : vector<8x128xf32>
    %c0_37 = arith.constant 0 : index
    %c0_38 = arith.constant 0 : index
    %52 = vector.load %arg9[%c0_37, %c0_38] : memref<8x128xf32, #tpu.memory_space<vmem>>, vector<8x128xf32>
    tpu.vector_store %arg9[%c0_37, %c0_38], %51 {strides = array<i32>} : memref<8x128xf32, #tpu.memory_space<vmem>>, vector<8x128xf32>,
    %c1_i32 = arith.constant 1 : i32
    %53 = vector.broadcast %c1_i32 : i32 to vector<8x128xi32>
    %c31_i32 = arith.constant 31 : i32
    %54 = vector.broadcast %c31_i32 : i32 to vector<8x128xi32>
    %55 = arith.andi %21, %54 : vector<8x128xi32>
    %56 = arith.shli %53, %55 : vector<8x128xi32>
    %c0_i32_39 = arith.constant 0 : i32
    %57 = vector.broadcast %c0_i32_39 : i32 to vector<8x128xi32>
    %58 = arith.cmpi sge, %21, %57 : vector<8x128xi32>
    %c32_i32 = arith.constant 32 : i32
    %59 = vector.broadcast %c32_i32 : i32 to vector<8x128xi32>
    %60 = arith.cmpi slt, %21, %59 : vector<8x128xi32>
    %61 = arith.andi %58, %60 : vector<8x128xi1>
    %c0_i32_40 = arith.constant 0 : i32
    %62 = vector.broadcast %c0_i32_40 : i32 to vector<8x128xi32>
    %63 = arith.select %61, %56, %62 : vector<8x128xi1>, vector<8x128xi32>
    %c32_i32_41 = arith.constant 32 : i32
    %64 = vector.broadcast %c32_i32_41 : i32 to vector<8x128xi32>
    %65 = arith.cmpi sge, %21, %64 : vector<8x128xi32>
    %c64_i32 = arith.constant 64 : i32
    %66 = vector.broadcast %c64_i32 : i32 to vector<8x128xi32>
    %67 = arith.cmpi slt, %21, %66 : vector<8x128xi32>
    %68 = arith.andi %65, %67 : vector<8x128xi1>
    %c0_i32_42 = arith.constant 0 : i32
    %69 = vector.broadcast %c0_i32_42 : i32 to vector<8x128xi32>
    %70 = arith.select %68, %56, %69 : vector<8x128xi1>, vector<8x128xi32>
    %c0_43 = arith.constant 0 : index
    %c0_44 = arith.constant 0 : index
    %c0_45 = arith.constant 0 : index
    %71 = vector.load %arg10[%c0_43, %c0_44, %c0_45] : memref<2x8x128xi32, #tpu.memory_space<vmem>>, vector<1x8x128xi32>
    %72 = vector.shape_cast %71 : vector<1x8x128xi32> to vector<8x128xi32>
    %73 = vector.shape_cast %63 : vector<8x128xi32> to vector<1x8x128xi32>
    %74 = vector.shape_cast %73 : vector<1x8x128xi32> to vector<8x128xi32>
    %75 = arith.ori %72, %74 : vector<8x128xi32>
    %c0_46 = arith.constant 0 : index
    %c0_47 = arith.constant 0 : index
    %c0_48 = arith.constant 0 : index
    %76 = vector.load %arg10[%c0_46, %c0_47, %c0_48] : memref<2x8x128xi32, #tpu.memory_space<vmem>>, vector<1x8x128xi32>
    %77 = vector.shape_cast %76 : vector<1x8x128xi32> to vector<8x128xi32>
    %78 = vector.shape_cast %75 : vector<8x128xi32> to vector<1x8x128xi32>
    tpu.vector_store %arg10[%c0_46, %c0_47, %c0_48], %78 {strides = array<i32>} : memref<2x8x128xi32, #tpu.memory_space<vmem>>, vector<1x8x128xi32>,
    %c1_49 = arith.constant 1 : index
    %c0_50 = arith.constant 0 : index
    %c0_51 = arith.constant 0 : index
    %79 = vector.load %arg10[%c1_49, %c0_50, %c0_51] : memref<2x8x128xi32, #tpu.memory_space<vmem>>, vector<1x8x128xi32>
    %80 = vector.shape_cast %79 : vector<1x8x128xi32> to vector<8x128xi32>
    %81 = vector.shape_cast %70 : vector<8x128xi32> to vector<1x8x128xi32>
    %82 = vector.shape_cast %81 : vector<1x8x128xi32> to vector<8x128xi32>
    %83 = arith.ori %80, %82 : vector<8x128xi32>
    %c1_52 = arith.constant 1 : index
    %c0_53 = arith.constant 0 : index
    %c0_54 = arith.constant 0 : index
    %84 = vector.load %arg10[%c1_52, %c0_53, %c0_54] : memref<2x8x128xi32, #tpu.memory_space<vmem>>, vector<1x8x128xi32>
    %85 = vector.shape_cast %84 : vector<1x8x128xi32> to vector<8x128xi32>
    %86 = vector.shape_cast %83 : vector<8x128xi32> to vector<1x8x128xi32>
    tpu.vector_store %arg10[%c1_52, %c0_53, %c0_54], %86 {strides = array<i32>} : memref<2x8x128xi32, #tpu.memory_space<vmem>>, vector<1x8x128xi32>,
    %c1_i32_55 = arith.constant 1 : i32
    %87 = arith.cmpi eq, %arg2, %c1_i32_55 : i32
    %88 = arith.extui %87 : i1 to i32
    %c0_i32_56 = arith.constant 0 : i32
    %89 = arith.cmpi ne, %88, %c0_i32_56 : i32
    scf.if %89 {
      %c0_57 = arith.constant 0 : index
      %c0_58 = arith.constant 0 : index
      %90 = vector.load %arg7[%c0_57, %c0_58] : memref<8x128xf32, #tpu.memory_space<vmem>>, vector<8x128xf32>
      %cst_59 = arith.constant dense<0.000000e+00> : vector<8xf32>
      %91 = vector.multi_reduction <add>, %90, %cst_59 [1] : vector<8x128xf32> to vector<8xf32>
      %92 = vector.shape_cast %91 : vector<8xf32> to vector<8x1xf32>
      %cst_60 = arith.constant dense<0.000000e+00> : vector<1xf32>
      %93 = vector.multi_reduction <add>, %92, %cst_60 [0] : vector<8x1xf32> to vector<1xf32>
      %94 = vector.shape_cast %93 : vector<1xf32> to vector<1x1xf32>
      %c0_61 = arith.constant 0 : index
      %c0_62 = arith.constant 0 : index
      %95 = vector.load %arg8[%c0_61, %c0_62] : memref<8x128xf32, #tpu.memory_space<vmem>>, vector<8x128xf32>
      %cst_63 = arith.constant dense<0.000000e+00> : vector<8xf32>
      %96 = vector.multi_reduction <add>, %95, %cst_63 [1] : vector<8x128xf32> to vector<8xf32>
      %97 = vector.shape_cast %96 : vector<8xf32> to vector<8x1xf32>
      %cst_64 = arith.constant dense<0.000000e+00> : vector<1xf32>
      %98 = vector.multi_reduction <add>, %97, %cst_64 [0] : vector<8x1xf32> to vector<1xf32>
      %99 = vector.shape_cast %98 : vector<1xf32> to vector<1x1xf32>
      %c0_65 = arith.constant 0 : index
      %c0_66 = arith.constant 0 : index
      %100 = vector.load %arg9[%c0_65, %c0_66] : memref<8x128xf32, #tpu.memory_space<vmem>>, vector<8x128xf32>
      %cst_67 = arith.constant dense<0.000000e+00> : vector<8xf32>
      %101 = vector.multi_reduction <add>, %100, %cst_67 [1] : vector<8x128xf32> to vector<8xf32>
      %102 = vector.shape_cast %101 : vector<8xf32> to vector<8x1xf32>
      %cst_68 = arith.constant dense<0.000000e+00> : vector<1xf32>
      %103 = vector.multi_reduction <add>, %102, %cst_68 [0] : vector<8x1xf32> to vector<1xf32>
      %104 = vector.shape_cast %103 : vector<1xf32> to vector<1x1xf32>
      %cst_69 = arith.constant 0.000000e+00 : f32
      %105 = vector.broadcast %cst_69 : f32 to vector<1x1xf32>
      %106 = tpu.concatenate %94, %99, %104, %105 in 1 : vector<1x1xf32>, vector<1x1xf32>, vector<1x1xf32>, vector<1x1xf32> -> vector<1x4xf32>
      %c0_70 = arith.constant 0 : index
      %c0_71 = arith.constant 0 : index
      %c0_72 = arith.constant 0 : index
      %107 = vector.load %arg5[%c0_70, %c0_71, %c0_72] : memref<1x1x4xf32, #tpu.memory_space<vmem>>, vector<1x1x4xf32>
      %108 = vector.shape_cast %107 : vector<1x1x4xf32> to vector<1x4xf32>
      %109 = vector.shape_cast %106 : vector<1x4xf32> to vector<1x1x4xf32>
      tpu.vector_store %arg5[%c0_70, %c0_71, %c0_72], %109 {strides = array<i32>} : memref<1x1x4xf32, #tpu.memory_space<vmem>>, vector<1x1x4xf32>,
      %c0_73 = arith.constant 0 : index
      %c0_74 = arith.constant 0 : index
      %c0_75 = arith.constant 0 : index
      %110 = vector.load %arg10[%c0_73, %c0_74, %c0_75] : memref<2x8x128xi32, #tpu.memory_space<vmem>>, vector<2x8x128xi32>
      %c0_76 = arith.constant 0 : index
      %c0_77 = arith.constant 0 : index
      %c0_78 = arith.constant 0 : index
      %c0_79 = arith.constant 0 : index
      %111 = vector.load %arg6[%c0_76, %c0_77, %c0_78, %c0_79] : memref<1x2x8x128xi32, #tpu.memory_space<vmem>>, vector<1x2x8x128xi32>
      %112 = vector.shape_cast %111 : vector<1x2x8x128xi32> to vector<2x8x128xi32>
      %113 = vector.shape_cast %110 : vector<2x8x128xi32> to vector<1x2x8x128xi32>
      tpu.vector_store %arg6[%c0_76, %c0_77, %c0_78, %c0_79], %113 {strides = array<i32>} : memref<1x2x8x128xi32, #tpu.memory_space<vmem>>, vector<1x2x8x128xi32>,
    } else {
    }
    return
  }
  func.func @transform_0(%arg0: i32, %arg1: i32, %arg2: i32) -> (i32, i32, i32, i32) {
    %c2_i32 = arith.constant 2 : i32
    %0 = arith.muli %arg1, %c2_i32 : i32
    %1 = arith.addi %0, %arg2 : i32
    %c0_i32 = arith.constant 0 : i32
    %c0_i32_0 = arith.constant 0 : i32
    %c0_i32_1 = arith.constant 0 : i32
    return %arg0, %c0_i32, %1, %c0_i32_0 : i32, i32, i32, i32
  }
  func.func @transform_1(%arg0: i32, %arg1: i32, %arg2: i32) -> (i32, i32, i32) {
    %c2_i32 = arith.constant 2 : i32
    %0 = arith.muli %arg1, %c2_i32 : i32
    %1 = arith.addi %0, %arg2 : i32
    %c0_i32 = arith.constant 0 : i32
    %c0_i32_0 = arith.constant 0 : i32
    return %arg0, %1, %c0_i32 : i32, i32, i32
  }
  func.func @transform_2(%arg0: i32, %arg1: i32, %arg2: i32) -> (i32, i32, i32) {
    %c2_i32 = arith.constant 2 : i32
    %0 = arith.muli %arg0, %c2_i32 : i32
    %1 = arith.addi %0, %arg1 : i32
    %c0_i32 = arith.constant 0 : i32
    %c0_i32_0 = arith.constant 0 : i32
    %c0_i32_1 = arith.constant 0 : i32
    return %1, %c0_i32, %c0_i32_0 : i32, i32, i32
  }
  func.func @transform_3(%arg0: i32, %arg1: i32, %arg2: i32) -> (i32, i32, i32, i32) {
    %c2_i32 = arith.constant 2 : i32
    %0 = arith.muli %arg0, %c2_i32 : i32
    %1 = arith.addi %0, %arg1 : i32
    %c0_i32 = arith.constant 0 : i32
    %c0_i32_0 = arith.constant 0 : i32
    %c0_i32_1 = arith.constant 0 : i32
    %c0_i32_2 = arith.constant 0 : i32
    return %1, %c0_i32, %c0_i32_0, %c0_i32_1 : i32, i32, i32, i32
  }
}

</mosaic_0001>

<llo_original>
// kernel: tpu_custom_call.1
$region0: #{tpu_custom_call.1}
  #allocation0 [shape = 'u32[]', space=smem, size = 0x4, offset = 0x4, fixed_abs, tag = 'smem constant byte address 0x4 - core index']
  #allocation1 [shape = 'u32[72,128]{1,0:T(1,128)}', space=vmem, size = 0x9000, scoped, tag = 'internal scratch']
  #allocation2 [shape = 'f32[8,128]{1,0:T(8,128)}', space=vmem, size = 0x1000, scoped, tag = 'scratch operand']
  #allocation3 [shape = 'f32[8,128]{1,0:T(8,128)}', space=vmem, size = 0x1000, scoped, tag = 'scratch operand']
  #allocation4 [shape = 'f32[8,128]{1,0:T(8,128)}', space=vmem, size = 0x1000, scoped, tag = 'scratch operand']
  #allocation5 [shape = 's32[2,8,128]{2,1,0:T(8,128)}', space=vmem, size = 0x2000, scoped, tag = 'scratch operand']
  %s0 = inlined_call_operand.hbm [shape: f32[2,4,32,128], index: 0, kind: input, shape index: {}]
  %s1 = inlined_call_operand.hbm [shape: s32[2,32,128], index: 1, kind: input, shape index: {}]
  %s2 = inlined_call_operand.hbm [shape: f32[4,1,4], index: 2, kind: output, shape index: {0}]
  %s3 = inlined_call_operand.hbm [shape: s32[4,2,8,128], index: 3, kind: output, shape index: {1}]
  %4 = xla_tuple %s2, %s3
  %s5 = sld [smem:[#allocation0]]
  $region65: #{tpu_custom_call.1} parent=0
    _
  %s7 = ssub.s32 1, %s5
  %s8 = scalar_select 0, %s7, %s5
  $region1: #{tpu_custom_call.1} parent=0
    #allocation6 [shape = 'u8[32768]{0}', space=vmem, size = 0x8000, scoped, tag = 'input window, operand 0']
    #allocation7 [shape = 's32[2]{0}', space=sflag, size = 0x8, scoped, tag = 'scoped memory for tpu_custom_call.1']
    #allocation8 [shape = 's32[2]{0}', space=sflag, size = 0x8, scoped, tag = 'scoped memory for tpu_custom_call.1']
    #allocation9 [shape = 'u8[8192]{0}', space=vmem, size = 0x2000, scoped, tag = 'input window, operand 1']
    #allocation10 [shape = 's32[2]{0}', space=sflag, size = 0x8, scoped, tag = 'scoped memory for tpu_custom_call.1']
    #allocation11 [shape = 'u8[1024]{0}', space=vmem, size = 0x400, scoped, tag = 'output window, operand 0']
    #allocation12 [shape = 'u8[16384]{0}', space=vmem, size = 0x4000, scoped, tag = 'output window, operand 1']
    #allocation13 [shape = 's32[2]{0}', space=sflag, size = 0x8, scoped, tag = 'scoped memory for tpu_custom_call.1']
    %9 = vsyncpa [#allocation7], 0
    %s10 = scalar_lea.sflag [#allocation7], 1
    %11 = vsyncpa %s10, 0
    %12 = vsyncpa [#allocation10], 0
    %s13 = scalar_lea.sflag [#allocation10], 1
    %14 = vsyncpa %s13, 0
    %15 = vsyncpa [#allocation8], 0
    %s16 = scalar_lea.sflag [#allocation8], 1
    %17 = vsyncpa %s16, 0
    %18 = vsyncpa [#allocation13], 0
    %s19 = scalar_lea.sflag [#allocation13], 1
    %20 = vsyncpa %s19, 0
    loop: start=0, step=1, limit=10
    $region2: #{tpu_custom_call.1} parent=1 // loop_pre_header
      _
    $region3: #{tpu_custom_call.1} parent=1 // loop_header
      %s22 = sphi 0, %s26
      %p23 = scmp.ge.s32.totalorder %s22, 10
      %s29 = sphi 0, %s48
      %s30 = sphi 0, %s44
      %s31 = sphi 0, %s40
      %s32 = sphi 0, %s29
      %s33 = sphi 0, %s30
      %s34 = sphi 0, %s31
      %s35 = sphi 0, %s32
      %s36 = sphi 0, %s33
      %s37 = sphi 0, %s34
      %s57 = sphi 0, %s59
      %s60 = sphi 0, %s57
      %s61 = sphi 0, %s60
      %s77 = sphi 0, %s61
      %s89 = sphi 0, %s91
      %s92 = sphi 0, %s89
      %s93 = sphi 0, %s92
      %s109 = sphi 0, %s93
      %s119 = sphi 0, %s121
      %s122 = sphi 0, %s119
      %s123 = sphi 0, %s122
      %s139 = sphi 0, %s123
      %s149 = sphi 0, %s151
      %s152 = sphi 0, %s149
      %s153 = sphi 0, %s152
      %s169 = sphi 0, %s153
    $region4: #{tpu_custom_call.1} parent=1 // loop_header_branch
      %25 = sbr.rel (%p23) target = $region8
    $region5: #{tpu_custom_call.1} parent=1 // loop_body
      %s27 = ssub.s32 %s22, 1
      %s28 = ssub.s32 %s22, 2
      %s38 = sadd.s32 1, %s31
      %p39 = scmp.ge.s32.totalorder %s38, 2
      %s40 = scalar_select %p39, 0, %s38
      %s41 = sadd.s32 1, %s30
      %s42 = scalar_select %p39, %s41, %s30
      %p43 = scmp.ge.s32.totalorder %s42, 2
      %s44 = scalar_select %p43, 0, %s42
      %s45 = sadd.s32 1, %s29
      %s46 = scalar_select %p43, %s45, %s29
      %p47 = scmp.ge.s32.totalorder %s46, 2
      %s48 = scalar_select %p47, 0, %s46
      %s49 = smul.u32 %s30, 2
      %s50 = sadd.s32 %s49, %s31
      %s51 = smul.u32 %s44, 2
      %s52 = sadd.s32 %s51, %s40
      %s53 = ssub.s32 %s29, %s48
      %s54 = ssub.s32 %s50, %s52
      %s55 = sor.u32 %s53, %s54
      %p56 = scmp.eq.s32.totalorder %s55, 0
      %s58 = sadd.s32 %s57, 1
      %s59 = scalar_select %p56, %s57, %s58
      %p62 = pneg %p56
      %p63 = scmp.eq.s32.totalorder %s22, 7
      %p64 = por %p62, %p63
      %p65 = scmp.ne.s32.totalorder %s57, %s60
      %p66 = scmp.eq.s32.totalorder %s22, 0
      %p67 = por %p65, %p66
      %p68 = scmp.ne.s32.totalorder %s57, %s60
      %p69 = scmp.eq.s32.totalorder %s27, 7
      %p70 = por %p68, %p69
      %p71 = scmp.ne.s32.totalorder %s60, %s61
      %p72 = scmp.eq.s32.totalorder %s27, 0
      %p73 = por %p71, %p72
      %p74 = scmp.ne.s32.totalorder %s60, %s61
      %p75 = scmp.eq.s32.totalorder %s28, 7
      %p76 = por %p74, %p75
      %p78 = scmp.ne.s32.totalorder %s61, %s77
      %p79 = scmp.eq.s32.totalorder %s28, 0
      %p80 = por %p78, %p79
      %s81 = smul.u32 %s30, 2
      %s82 = sadd.s32 %s81, %s31
      %s83 = smul.u32 %s44, 2
      %s84 = sadd.s32 %s83, %s40
      %s85 = ssub.s32 %s29, %s48
      %s86 = ssub.s32 %s82, %s84
      %s87 = sor.u32 %s85, %s86
      %p88 = scmp.eq.s32.totalorder %s87, 0
      %s90 = sadd.s32 %s89, 1
      %s91 = scalar_select %p88, %s89, %s90
      %p94 = pneg %p88
      %p95 = scmp.eq.s32.totalorder %s22, 7
      %p96 = por %p94, %p95
      %p97 = scmp.ne.s32.totalorder %s89, %s92
      %p98 = scmp.eq.s32.totalorder %s22, 0
      %p99 = por %p97, %p98
      %p100 = scmp.ne.s32.totalorder %s89, %s92
      %p101 = scmp.eq.s32.totalorder %s27, 7
      %p102 = por %p100, %p101
      %p103 = scmp.ne.s32.totalorder %s92, %s93
      %p104 = scmp.eq.s32.totalorder %s27, 0
      %p105 = por %p103, %p104
      %p106 = scmp.ne.s32.totalorder %s92, %s93
      %p107 = scmp.eq.s32.totalorder %s28, 7
      %p108 = por %p106, %p107
      %p110 = scmp.ne.s32.totalorder %s93, %s109
      %p111 = scmp.eq.s32.totalorder %s28, 0
      %p112 = por %p110, %p111
      %s113 = smul.u32 %s29, 2
      %s114 = sadd.s32 %s113, %s30
      %s115 = smul.u32 %s48, 2
      %s116 = sadd.s32 %s115, %s44
      %s117 = ssub.s32 %s114, %s116
      %p118 = scmp.eq.s32.totalorder %s117, 0
      %s120 = sadd.s32 %s119, 1
      %s121 = scalar_select %p118, %s119, %s120
      %p124 = pneg %p118
      %p125 = scmp.eq.s32.totalorder %s22, 7
      %p126 = por %p124, %p125
      %p127 = scmp.ne.s32.totalorder %s119, %s122
      %p128 = scmp.eq.s32.totalorder %s22, 0
      %p129 = por %p127, %p128
      %p130 = scmp.ne.s32.totalorder %s119, %s122
      %p131 = scmp.eq.s32.totalorder %s27, 7
      %p132 = por %p130, %p131
      %p133 = scmp.ne.s32.totalorder %s122, %s123
      %p134 = scmp.eq.s32.totalorder %s27, 0
      %p135 = por %p133, %p134
      %p136 = scmp.ne.s32.totalorder %s122, %s123
      %p137 = scmp.eq.s32.totalorder %s28, 7
      %p138 = por %p136, %p137
      %p140 = scmp.ne.s32.totalorder %s123, %s139
      %p141 = scmp.eq.s32.totalorder %s28, 0
      %p142 = por %p140, %p141
      %s143 = smul.u32 %s29, 2
      %s144 = sadd.s32 %s143, %s30
      %s145 = smul.u32 %s48, 2
      %s146 = sadd.s32 %s145, %s44
      %s147 = ssub.s32 %s144, %s146
      %p148 = scmp.eq.s32.totalorder %s147, 0
      %s150 = sadd.s32 %s149, 1
      %s151 = scalar_select %p148, %s149, %s150
      %p154 = pneg %p148
      %p155 = scmp.eq.s32.totalorder %s22, 7
      %p156 = por %p154, %p155
      %p157 = scmp.ne.s32.totalorder %s149, %s152
      %p158 = scmp.eq.s32.totalorder %s22, 0
      %p159 = por %p157, %p158
      %p160 = scmp.ne.s32.totalorder %s149, %s152
      %p161 = scmp.eq.s32.totalorder %s27, 7
      %p162 = por %p160, %p161
      %p163 = scmp.ne.s32.totalorder %s152, %s153
      %p164 = scmp.eq.s32.totalorder %s27, 0
      %p165 = por %p163, %p164
      %p166 = scmp.ne.s32.totalorder %s152, %s153
      %p167 = scmp.eq.s32.totalorder %s28, 7
      %p168 = por %p166, %p167
      %p170 = scmp.ne.s32.totalorder %s153, %s169
      %p171 = scmp.eq.s32.totalorder %s28, 0
      %p172 = por %p170, %p171
      %p173 = scmp.le.s32.totalorder 1, %s22
      %p174 = scmp.lt.s32.totalorder %s22, 9
      %p175 = pnand %p173, %p174
      %p176 = pneg %p175
      // Predicated region
      $region9: #{tpu_custom_call.1} parent=5 // pred_check
        _
      $region10: #{tpu_custom_call.1} parent=5 // pred_check_branch
        %178 = sbr.rel (%p175) target = $region12
      $region11: #{tpu_custom_call.1} parent=5 // pred_region
        %s179 = ssub.s32 %s22, 1
      $region12: #{tpu_custom_call.1} parent=5 // pred_fallthru
        _
      %p180 = scmp.lt.s32.totalorder %s22, 8
      // Predicated region
      $region13: #{tpu_custom_call.1} parent=5 // pred_check
        %p181 = pneg %p180
      $region14: #{tpu_custom_call.1} parent=5 // pred_check_branch
        %183 = sbr.rel (%p181) target = $region16
      $region15: #{tpu_custom_call.1} parent=5 // pred_region
        // Predicated region
        $region17: #{tpu_custom_call.1} parent=15 // pred_check
          %p184 = pneg %p67
        $region18: #{tpu_custom_call.1} parent=15 // pred_check_branch
          %186 = sbr.rel (%p184) target = $region20
        $region19: #{tpu_custom_call.1} parent=15 // pred_region
          %s187 = sand.u32 %s57, 1
          %s188 = scalar_lea.sflag [#allocation7], %s187
          %s189 = sand.u32 %s57, 1
          %s190 = smul.addr %s189, 32
          %s191 = scalar_lea.vmem [#allocation6], %s190
          %s192 = smul.u32 %s30, 2
          %s193 = sadd.s32 %s192, %s31
          %195 = vsyncadd %s188, 0
          %s196 = smul.addr %s29, 16
          %s197 = sadd.s32 %s193, %s196
          %s198 = smul.addr %s197, 8
          %s199 = scalar_lea.hbm %s0, %s198
          %s200 = sshll.u32 %s199, 4
          %s201 = int_to_ptr.hbm [resolvable:$true] %s200
          %s202 = sshll.u32 %s191, 4
          %s203 = int_to_ptr.vmem [resolvable:$true] %s202
          %208 = dma.hbm_to_vmem [thread:$0]  %s201, 512, %s203, %s188, 512, 128, 8
        $region20: #{tpu_custom_call.1} parent=15 // pred_fallthru
          _
        // Predicated region
        $region21: #{tpu_custom_call.1} parent=15 // pred_check
          %p209 = pneg %p99
        $region22: #{tpu_custom_call.1} parent=15 // pred_check_branch
          %211 = sbr.rel (%p209) target = $region24
        $region23: #{tpu_custom_call.1} parent=15 // pred_region
          %s212 = sand.u32 %s89, 1
          %s213 = scalar_lea.sflag [#allocation10], %s212
          %s214 = sand.u32 %s89, 1
          %s215 = smul.addr %s214, 8
          %s216 = scalar_lea.vmem [#allocation9], %s215
          %s217 = smul.u32 %s30, 2
          %s218 = sadd.s32 %s217, %s31
          %220 = vsyncadd %s213, 0
          %s221 = smul.addr %s29, 4
          %s222 = sadd.s32 %s218, %s221
          %s223 = smul.addr %s222, 8
          %s224 = scalar_lea.hbm %s1, %s223
          %s226 = sshll.u32 %s224, 4
          %s227 = int_to_ptr.hbm [resolvable:$true] %s226
          %s228 = sshll.u32 %s216, 4
          %s229 = int_to_ptr.vmem [resolvable:$true] %s228
          %231 = dma.hbm_to_vmem [thread:$0]  %s227, 128, %s229, %s213
        $region24: #{tpu_custom_call.1} parent=15 // pred_fallthru
          _
      $region16: #{tpu_custom_call.1} parent=5 // pred_fallthru
        _
      %p232 = scmp.le.s32.totalorder 1, %s22
      %p233 = scmp.lt.s32.totalorder %s22, 9
      %p234 = pnand %p232, %p233
      %p235 = pneg %p234
      // Predicated region
      $region25: #{tpu_custom_call.1} parent=5 // pred_check
        _
      $region26: #{tpu_custom_call.1} parent=5 // pred_check_branch
        %237 = sbr.rel (%p234) target = $region28
      $region27: #{tpu_custom_call.1} parent=5 // pred_region
        %s238 = ssub.s32 %s22, 1
        %s239 = sand.u32 %s60, 1
        %s240 = scalar_lea.sflag [#allocation7], %s239
        %s241 = sand.u32 %s60, 1
        %s242 = smul.addr %s241, 32
        %s243 = scalar_lea.vmem [#allocation6], %s242
        // Predicated region
        $region29: #{tpu_custom_call.1} parent=27 // pred_check
          %p244 = pneg %p73
        $region30: #{tpu_custom_call.1} parent=27 // pred_check_branch
          %246 = sbr.rel (%p244) target = $region32
        $region31: #{tpu_custom_call.1} parent=27 // pred_region
          %248 = dma.done %s240, 512
        $region32: #{tpu_custom_call.1} parent=27 // pred_fallthru
          _
        %s249 = sand.u32 %s92, 1
        %s250 = scalar_lea.sflag [#allocation10], %s249
        %s251 = sand.u32 %s92, 1
        %s252 = smul.addr %s251, 8
        %s253 = scalar_lea.vmem [#allocation9], %s252
        // Predicated region
        $region33: #{tpu_custom_call.1} parent=27 // pred_check
          %p254 = pneg %p105
        $region34: #{tpu_custom_call.1} parent=27 // pred_check_branch
          %256 = sbr.rel (%p254) target = $region36
        $region35: #{tpu_custom_call.1} parent=27 // pred_region
          %258 = dma.done %s250, 128
        $region36: #{tpu_custom_call.1} parent=27 // pred_fallthru
          _
        %s259 = sand.u32 %s60, 1
        %s260 = scalar_lea.sflag [#allocation7], %s259
        %s261 = sand.u32 %s60, 1
        %s262 = smul.addr %s261, 32
        %s263 = scalar_lea.vmem [#allocation6], %s262
        %p264 = pneg %p73
        %p265 = pneg %p70
        %s266 = sand.u32 %s92, 1
        %s267 = scalar_lea.sflag [#allocation10], %s266
        %s268 = sand.u32 %s92, 1
        %s269 = smul.addr %s268, 8
        %s270 = scalar_lea.vmem [#allocation9], %s269
        %p271 = pneg %p105
        %p272 = pneg %p102
        %p273 = pneg %p135
        %p274 = pneg %p132
        %s275 = sand.u32 %s122, 1
        %s276 = scalar_lea.sflag [#allocation8], %s275
        %s277 = sand.u32 %s122, 1
        %s278 = scalar_lea.vmem [#allocation11], %s277
        %p279 = pneg %p165
        %p280 = pneg %p162
        %s281 = sand.u32 %s152, 1
        %s282 = scalar_lea.sflag [#allocation13], %s281
        %s283 = sand.u32 %s152, 1
        %s284 = smul.addr %s283, 16
        %s285 = scalar_lea.vmem [#allocation12], %s284
        %s286 = smul.u32 %s33, 2
        %s287 = sadd.s32 %s286, %s34
        %s288 = smul.u32 %s33, 2
        %s289 = sadd.s32 %s288, %s34
        %s290 = smul.u32 %s32, 2
        %s291 = sadd.s32 %s290, %s33
        %s292 = smul.u32 %s32, 2
        %s293 = sadd.s32 %s292, %s33
        %p294 = scmp.eq.s32.totalorder %s34, 0
        // Predicated region
        $region37: #{tpu_custom_call.1} parent=27 // pred_check
          %p295 = pneg %p294
        $region38: #{tpu_custom_call.1} parent=27 // pred_check_branch
          %297 = sbr.rel (%p295) target = $region40
        $region39: #{tpu_custom_call.1} parent=27 // pred_region
          %298 = vst [vmem:[#allocation2] sm:$0xff] 0.0
          %299 = vst [vmem:[#allocation3] sm:$0xff] 0.0
          %300 = vst [vmem:[#allocation4] sm:$0xff] 0.0
          %301 = vst [vmem:[#allocation5] sm:$0xff] 0
          %302 = vst [vmem:[#allocation5 + $0x8] sm:$0xff] 0
        $region40: #{tpu_custom_call.1} parent=27 // pred_fallthru
          _
        %v303 = vld [vmem:[%s243] sm:$0xff]
        %s304 = scalar_lea.vmem %s243, 8 [#allocation6]
        %v305 = vld [vmem:[%s304] sm:$0xff]
        %v306 = vmax.f32 %v303, %v305
        %s307 = scalar_lea.vmem %s243, 16 [#allocation6]
        %v308 = vld [vmem:[%s307] sm:$0xff]
        %v309 = vmax.f32 %v306, %v308
        %s310 = scalar_lea.vmem %s243, 24 [#allocation6]
        %v311 = vld [vmem:[%s310] sm:$0xff]
        %v312 = vmax.f32 %v309, %v311
        %vm313 = vcmp.lt.f32.partialorder %v303, %v312
        %v314 = vsel %vm313, 1, 0
        %v315 = vcvt.s32.f32 %v314
        %v316 = vmul.f32 %v305, %v315
        %v317 = vld [vmem:[%s253] sm:$0xff]
        %vm318 = vcmp.gt.s32.totalorder %v317, 0
        %v319 = vsel %vm318, 1, 0
        %v320 = vcvt.s32.f32 %v319
        %vm321 = vcmp.gt.f32.partialorder %v320, 0.5
        %v322 = vsub.f32 1.0, %v316
        %v323 = vsel %vm321, %v316, %v322
        %v324 = vlog2.pop %v323
        %v325 = vmul.f32 %v324, 0.6931472
        %v326 = vmax.f32 %v325, -100.0
        %v327 = vsub.f32 0.0, %v326
        %v328 = vld [vmem:[#allocation2] sm:$0xff]
        %v329 = vadd.f32 %v327, 0.0
        %v330 = vadd.f32 %v328, %v329
        %331 = vst [vmem:[#allocation2] sm:$0xff] %v330
        %v332 = vld [vmem:[#allocation3] sm:$0xff]
        %v333 = vmul.f32 %v316, %v320
        %v334 = vadd.f32 %v333, 0.0
        %v335 = vadd.f32 %v332, %v334
        %336 = vst [vmem:[#allocation3] sm:$0xff] %v335
        %v337 = vld [vmem:[#allocation4] sm:$0xff]
        %v338 = vadd.f32 %v316, %v320
        %v339 = vadd.f32 %v338, 0.0
        %v340 = vadd.f32 %v337, %v339
        %341 = vst [vmem:[#allocation4] sm:$0xff] %v340
        %v342 = vand.u32 %v317, 31
        %v343 = vshll.u32 1, %v342
        %vm344 = vcmp.ge.s32.totalorder %v317, 0
        %vm345 = vcmp.lt.s32.totalorder %v317, 32
        %vm346 = vmand %vm344, %vm345
        %v347 = vsel %vm346, %v343, 0
        %vm348 = vcmp.ge.s32.totalorder %v317, 32
        %vm349 = vcmp.lt.s32.totalorder %v317, 64
        %vm350 = vmand %vm348, %vm349
        %v351 = vsel %vm350, %v343, 0
        %v352 = vld [vmem:[#allocation5] sm:$0xff]
        %v353 = vor.u32 %v352, %v347
        %354 = vst [vmem:[#allocation5] sm:$0xff] %v353
        %s355 = scalar_lea.vmem [#allocation5], 8
        %v356 = vld [vmem:[%s355] sm:$0xff]
        %v357 = vor.u32 %v356, %v351
        %358 = vst [vmem:[%s355] sm:$0xff] %v357
        %p359 = scmp.eq.s32.totalorder %s34, 1
        // Predicated region
        $region41: #{tpu_custom_call.1} parent=27 // pred_check
          %p360 = pneg %p359
        $region42: #{tpu_custom_call.1} parent=27 // pred_check_branch
          %362 = sbr.rel (%p360) target = $region44
        $region43: #{tpu_custom_call.1} parent=27 // pred_region
          %v363 = vld [vmem:[#allocation2] sm:$0xff]
          %364 = vadd.xlane.f32.xlu0 %v363
          %v365 = vpop.xlane.xlu0 %364
          %v366 = vrot.slane %v365, 4
          %v367 = vadd.f32 %v365, %v366
          %v368 = vrot.slane %v367, 2
          %v369 = vadd.f32 %v367, %v368
          %v370 = vrot.slane %v369, 1
          %v371 = vadd.f32 %v369, %v370
          %v372 = vld [vmem:[#allocation3] sm:$0xff]
          %373 = vadd.xlane.f32.xlu0 %v372
          %v374 = vpop.xlane.xlu0 %373
          %v375 = vrot.slane %v374, 4
          %v376 = vadd.f32 %v374, %v375
          %v377 = vrot.slane %v376, 2
          %v378 = vadd.f32 %v376, %v377
          %v379 = vrot.slane %v378, 1
          %v380 = vadd.f32 %v378, %v379
          %v381 = vld [vmem:[#allocation4] sm:$0xff]
          %382 = vadd.xlane.f32.xlu0 %v381
          %v383 = vpop.xlane.xlu0 %382
          %v384 = vrot.slane %v383, 4
          %v385 = vadd.f32 %v383, %v384
          %v386 = vrot.slane %v385, 2
          %v387 = vadd.f32 %v385, %v386
          %v388 = vrot.slane %v387, 1
          %v389 = vadd.f32 %v387, %v388
          %vm390 = vcmask 7168
          %v391 = vsel %vm390, %v371, %v380
          %vm392 = vcmask 15360
          %v393 = vsel %vm392, %v391, %v389
          %vm394 = vcmask 23552
          %v395 = vsel %vm394, %v393, 0.0
          %vm396 = vcmask 24576
          %397 = vst.msk [vmem:[%s278] sm:$0x1] %vm396, %v395
          %v398 = vld [vmem:[#allocation5] sm:$0xff]
          %v399 = vld [vmem:[#allocation5 + $0x8] sm:$0xff]
          %400 = vst [vmem:[%s285] sm:$0xff] %v398
          %401 = vst [vmem:[%s285 + $0x8] sm:$0xff] %v399
        $region44: #{tpu_custom_call.1} parent=27 // pred_fallthru
          _
        %s402 = sand.u32 %s122, 1
        %s403 = scalar_lea.sflag [#allocation8], %s402
        %s404 = sand.u32 %s122, 1
        %s405 = scalar_lea.vmem [#allocation11], %s404
        %s406 = sand.u32 %s152, 1
        %s407 = scalar_lea.sflag [#allocation13], %s406
        %s408 = sand.u32 %s152, 1
        %s409 = smul.addr %s408, 16
        %s410 = scalar_lea.vmem [#allocation12], %s409
        // Predicated region
        $region45: #{tpu_custom_call.1} parent=27 // pred_check
          %p411 = pneg %p132
        $region46: #{tpu_custom_call.1} parent=27 // pred_check_branch
          %413 = sbr.rel (%p411) target = $region48
        $region47: #{tpu_custom_call.1} parent=27 // pred_region
          %s414 = smul.u32 %s32, 2
          %s415 = sadd.s32 %s414, %s33
          %417 = vsyncadd %s403, 0
          %s418 = scalar_lea.hbm %s2, %s415
          %s420 = sshll.u32 %s405, 4
          %s421 = int_to_ptr.vmem [resolvable:$true] %s420
          %s422 = sshll.u32 %s418, 4
          %s423 = int_to_ptr.hbm [resolvable:$true] %s422
          %425 = dma.vmem_to_hbm [thread:$0]  %s421, 16, %s423, %s403
        $region48: #{tpu_custom_call.1} parent=27 // pred_fallthru
          _
        // Predicated region
        $region49: #{tpu_custom_call.1} parent=27 // pred_check
          %p426 = pneg %p162
        $region50: #{tpu_custom_call.1} parent=27 // pred_check_branch
          %428 = sbr.rel (%p426) target = $region52
        $region51: #{tpu_custom_call.1} parent=27 // pred_region
          %s429 = smul.u32 %s32, 2
          %s430 = sadd.s32 %s429, %s33
          %432 = vsyncadd %s407, 0
          %s433 = smul.addr %s430, 2
          %s434 = smul.addr %s433, 8
          %s435 = scalar_lea.hbm %s3, %s434
          %s436 = sshll.u32 %s410, 4
          %s437 = int_to_ptr.vmem [resolvable:$true] %s436
          %s438 = sshll.u32 %s435, 4
          %s439 = int_to_ptr.hbm [resolvable:$true] %s438
          %444 = dma.vmem_to_hbm [thread:$0]  %s437, 256, %s439, %s407, 128, 128, 8
        $region52: #{tpu_custom_call.1} parent=27 // pred_fallthru
          _
      $region28: #{tpu_custom_call.1} parent=5 // pred_fallthru
        _
      %p445 = scmp.le.s32.totalorder 2, %s22
      // Predicated region
      $region53: #{tpu_custom_call.1} parent=5 // pred_check
        %p446 = pneg %p445
      $region54: #{tpu_custom_call.1} parent=5 // pred_check_branch
        %448 = sbr.rel (%p446) target = $region56
      $region55: #{tpu_custom_call.1} parent=5 // pred_region
        %s449 = ssub.s32 %s22, 2
        // Predicated region
        $region57: #{tpu_custom_call.1} parent=55 // pred_check
          %p450 = pneg %p138
        $region58: #{tpu_custom_call.1} parent=55 // pred_check_branch
          %452 = sbr.rel (%p450) target = $region60
        $region59: #{tpu_custom_call.1} parent=55 // pred_region
          %s453 = sand.u32 %s123, 1
          %s454 = scalar_lea.sflag [#allocation8], %s453
          %s455 = sand.u32 %s123, 1
          %s456 = scalar_lea.vmem [#allocation11], %s455
          %458 = dma.done %s454, 16
        $region60: #{tpu_custom_call.1} parent=55 // pred_fallthru
          _
        // Predicated region
        $region61: #{tpu_custom_call.1} parent=55 // pred_check
          %p459 = pneg %p168
        $region62: #{tpu_custom_call.1} parent=55 // pred_check_branch
          %461 = sbr.rel (%p459) target = $region64
        $region63: #{tpu_custom_call.1} parent=55 // pred_region
          %s462 = sand.u32 %s153, 1
          %s463 = scalar_lea.sflag [#allocation13], %s462
          %s464 = sand.u32 %s153, 1
          %s465 = smul.addr %s464, 16
          %s466 = scalar_lea.vmem [#allocation12], %s465
          %468 = dma.done %s463, 256
        $region64: #{tpu_custom_call.1} parent=55 // pred_fallthru
          _
      $region56: #{tpu_custom_call.1} parent=5 // pred_fallthru
        _
    $region6: #{tpu_custom_call.1} parent=1 // loop_footer
      %s26 = sadd.s32 1, %s22
    $region7: #{tpu_custom_call.1} parent=1 // loop_footer_branch
      %21 = sbr.rel target = $region3
    $region8: #{tpu_custom_call.1} parent=1 // loop_exit
      _
    %469 = vsyncpa [#allocation7], 1
    %s470 = scalar_lea.sflag [#allocation7], 1
    %471 = vsyncpa %s470, 1
    %472 = vsyncpa [#allocation10], 1
    %s473 = scalar_lea.sflag [#allocation10], 1
    %474 = vsyncpa %s473, 1
    %475 = vsyncpa [#allocation8], 1
    %s476 = scalar_lea.sflag [#allocation8], 1
    %477 = vsyncpa %s476, 1
    %478 = vsyncpa [#allocation13], 1
    %s479 = scalar_lea.sflag [#allocation13], 1
    %480 = vsyncpa %s479, 1

</llo_original>
